<compile_context>
chip_gen: v5e
topology: v5e:2x2
jax: 0.10.0
libtpu: 0.0.40
codegen_flags: <defaults>
</compile_context>

<pallas_src>
import jax
import jax.numpy as jnp
from jax import lax
from jax.experimental import pallas as pl
from jax.experimental.pallas import tpu as pltpu

D_IN = 784
D_IN_PAD = 896      # 7 * 128
D_H = 124
D_H_PAD = 128
D_OUT = 10
D_OUT_PAD = 128


def _round_up(n, m):
    return ((n + m - 1) // m) * m


def lineartanh_kernel(x_ref, w0_ref, b0_ref, w1_ref, o_ref):
    # x_ref:  (TB, 896)  bf16
    # w0_ref: (896, 128) bf16   (zero-padded rows/cols)
    # b0_ref: (1, 128)   f32    (zero-padded)
    # w1_ref: (128, 128) bf16   (rows >=124 zero, cols >=10 zero)
    # o_ref:  (TB, 128)  f32    (only cols < 10 meaningful)

    # f0: Linear(784 -> 124), bias added in f32.
    h = jnp.dot(x_ref[...], w0_ref[...], preferred_element_type=jnp.float32)
    h = h + b0_ref[...]

    # f1: Tanh (f32; padded hidden lanes are tanh(0)=0).
    h = jnp.tanh(h)

    # f2: Linear(124 -> 10), no bias; padded w1 rows/cols contribute nothing.
    logits = jnp.dot(h.astype(jnp.bfloat16), w1_ref[...],
                     preferred_element_type=jnp.float32)

    # f3: LogSoftmax over the 10 real classes only (mask padded lanes).
    col = lax.broadcasted_iota(jnp.int32, logits.shape, 1)
    valid = col < D_OUT
    masked = jnp.where(valid, logits, jnp.float32(-1e30))

    m = jnp.max(masked, axis=-1, keepdims=True)
    shifted = masked - m
    lse = jnp.log(jnp.sum(jnp.exp(shifted), axis=-1, keepdims=True))
    o_ref[...] = (shifted - lse).astype(o_ref.dtype)


def lineartanh_forward(x, w0, b0, w1, *, max_tb=2048):
    """x: (B, 1, 28, 28) or (B, 784). w0: (784, 124), b0: (1, 124), w1: (124, 10)."""
    B = x.shape[0]
    x2d = x.reshape(B, D_IN).astype(jnp.float32)

    # Batch tile: multiple of 8 sublanes, capped so small batches stay small.
    TB = min(max_tb, _round_up(B, 8))
    B_pad = _round_up(B, TB)

    # Pad + cast operands outside the kernel (zero padding is exact).
    xp = jnp.zeros((B_pad, D_IN_PAD), jnp.bfloat16)
    xp = xp.at[:B, :D_IN].set(x2d.astype(jnp.bfloat16))

    w0p = jnp.zeros((D_IN_PAD, D_H_PAD), jnp.bfloat16)
    w0p = w0p.at[:D_IN, :D_H].set(w0.astype(jnp.bfloat16))

    b0p = jnp.zeros((1, D_H_PAD), jnp.float32)
    b0p = b0p.at[:, :D_H].set(b0.astype(jnp.float32))

    w1p = jnp.zeros((D_H_PAD, D_OUT_PAD), jnp.bfloat16)
    w1p = w1p.at[:D_H, :D_OUT].set(w1.astype(jnp.bfloat16))

    grid = (B_pad // TB,)

    out = pl.pallas_call(
        lineartanh_kernel,
        out_shape=jax.ShapeDtypeStruct((B_pad, D_OUT_PAD), jnp.float32),
        grid_spec=pl.GridSpec(
            grid=grid,
            in_specs=[
                pl.BlockSpec((TB, D_IN_PAD), lambda i: (i, 0)),       # x: batch-tiled
                pl.BlockSpec((D_IN_PAD, D_H_PAD), lambda i: (0, 0)),  # w0: resident
                pl.BlockSpec((1, D_H_PAD), lambda i: (0, 0)),         # b0: resident
                pl.BlockSpec((D_H_PAD, D_OUT_PAD), lambda i: (0, 0)), # w1: resident
            ],
            out_specs=pl.BlockSpec((TB, D_OUT_PAD), lambda i: (i, 0)),
        ),
        compiler_params=pltpu.CompilerParams(
            dimension_semantics=("parallel",)),
        cost_estimate=pl.CostEstimate(
            flops=2 * B_pad * (D_IN_PAD * D_H_PAD + D_H_PAD * D_OUT_PAD),
            transcendentals=B_pad * (D_H_PAD + D_OUT_PAD),
            bytes_accessed=(B_pad * D_IN_PAD * 2            # x (bf16)
                            + B_pad * D_OUT_PAD * 4         # out (f32)
                            + D_IN_PAD * D_H_PAD * 2        # w0
                            + D_H_PAD * D_OUT_PAD * 2)),    # w1
    )(xp, w0p, b0p, w1p)

    return out[:B, :D_OUT]


def init_params(key):
    """Deterministic synthetic parameters matching the nn.Module shapes.

    PyTorch stores Linear weights as (out, in); we store the transposed
    (in, out) layout so the kernel computes x @ W directly.
    """
    k0, k1, k2 = jax.random.split(key, 3)
    bound0 = 1.0 / jnp.sqrt(784.0)
    bound1 = 1.0 / jnp.sqrt(124.0)
    w0 = jax.random.uniform(k0, (784, 124), jnp.float32, -bound0, bound0)
    b0 = jax.random.uniform(k1, (1, 124), jnp.float32, -bound0, bound0)
    w1 = jax.random.uniform(k2, (124, 10), jnp.float32, -bound1, bound1)
    return w0, b0, w1


if __name__ == "__main__":
    key = jax.random.PRNGKey(0)
    kx, kp = jax.random.split(key)

    # Small MNIST-like input, NCHW: batch=2, channels=1, 28x28 spatial.
    x = jax.random.normal(kx, (2, 1, 28, 28), jnp.float32)
    w0, b0, w1 = init_params(kp)

    out = lineartanh_forward(x, w0, b0, w1)
    out = jax.block_until_ready(out)

    # Sanity check against a pure-JAX f32 reference (bf16 matmuls => looser tol).
    x2d = x.reshape(2, 784)
    ref = jnp.tanh(x2d @ w0 + b0) @ w1
    ref = ref - jax.scipy.special.logsumexp(ref, axis=1, keepdims=True)
    assert out.shape == (2, 10)
    assert jnp.allclose(out, ref, atol=5e-2, rtol=0), (
        float(jnp.max(jnp.abs(out - ref))))

    print("KERNEL_OK")
</pallas_src>

<mosaic_0001>
module attributes {stable_mosaic.version = 11 : i64} {
  func.func @lineartanh_kernel(%arg0: i32, %arg1: memref<8x896xbf16, #tpu.memory_space<vmem>>, %arg2: memref<896x128xbf16, #tpu.memory_space<vmem>>, %arg3: memref<1x128xf32, #tpu.memory_space<vmem>>, %arg4: memref<128x128xbf16, #tpu.memory_space<vmem>>, %arg5: memref<8x128xf32, #tpu.memory_space<vmem>>) attributes {dimension_semantics = [#tpu.dimension_semantics<parallel>], iteration_bounds = array<i64: 1>, scalar_prefetch = 0 : i64, scratch_operands = 0 : i64, tpu.core_type = #tpu.core_type<tc>, window_params = [{transform_indices = @transform_0, window_bounds = array<i64: 8, 896>}, {pipeline_mode = #tpu.pipeline_mode<synchronous>, transform_indices = @transform_1, window_bounds = array<i64: 896, 128>}, {pipeline_mode = #tpu.pipeline_mode<synchronous>, transform_indices = @transform_2, window_bounds = array<i64: 1, 128>}, {pipeline_mode = #tpu.pipeline_mode<synchronous>, transform_indices = @transform_3, window_bounds = array<i64: 128, 128>}, {transform_indices = @transform_4, window_bounds = array<i64: 8, 128>}]} {
    %c0 = arith.constant 0 : index
    %c0_0 = arith.constant 0 : index
    %0 = vector.load %arg1[%c0, %c0_0] : memref<8x896xbf16, #tpu.memory_space<vmem>>, vector<8x896xbf16>
    %c0_1 = arith.constant 0 : index
    %c0_2 = arith.constant 0 : index
    %1 = vector.load %arg2[%c0_1, %c0_2] : memref<896x128xbf16, #tpu.memory_space<vmem>>, vector<896x128xbf16>
    %cst = arith.constant dense<0.000000e+00> : vector<8x128xf32>
    %2 = tpu.matmul %0, %1, %cst {dimension_numbers = #tpu.dot_dimension_numbers<[1], [0], [0], [1], [0, 0, 1, 1], [], []>} : vector<8x896xbf16>, vector<896x128xbf16>, vector<8x128xf32> -> vector<8x128xf32>
    %c0_3 = arith.constant 0 : index
    %c0_4 = arith.constant 0 : index
    %3 = vector.load %arg3[%c0_3, %c0_4] : memref<1x128xf32, #tpu.memory_space<vmem>>, vector<1x128xf32>
    %4 = vector.broadcast %3 : vector<1x128xf32> to vector<8x128xf32>
    %5 = arith.addf %2, %4 : vector<8x128xf32>
    %6 = math.tanh %5 : vector<8x128xf32>
    %7 = arith.truncf %6 : vector<8x128xf32> to vector<8x128xbf16>
    %c0_5 = arith.constant 0 : index
    %c0_6 = arith.constant 0 : index
    %8 = vector.load %arg4[%c0_5, %c0_6] : memref<128x128xbf16, #tpu.memory_space<vmem>>, vector<128x128xbf16>
    %cst_7 = arith.constant dense<0.000000e+00> : vector<8x128xf32>
    %9 = tpu.matmul %7, %8, %cst_7 {dimension_numbers = #tpu.dot_dimension_numbers<[1], [0], [0], [1], [0, 0, 1, 1], [], []>} : vector<8x128xbf16>, vector<128x128xbf16>, vector<8x128xf32> -> vector<8x128xf32>
    %10 = tpu.iota {dimensions = array<i32: 1>} : vector<8x128xi32>
    %c10_i32 = arith.constant 10 : i32
    %11 = vector.broadcast %c10_i32 : i32 to vector<8x128xi32>
    %12 = arith.cmpi slt, %10, %11 : vector<8x128xi32>
    %cst_8 = arith.constant -1.000000e+30 : f32
    %13 = vector.broadcast %cst_8 : f32 to vector<8x128xf32>
    %14 = arith.select %12, %9, %13 : vector<8x128xi1>, vector<8x128xf32>
    %cst_9 = arith.constant dense<0xFF800000> : vector<8xf32>
    %15 = vector.multi_reduction <maximumf>, %14, %cst_9 [1] : vector<8x128xf32> to vector<8xf32>
    %16 = vector.shape_cast %15 : vector<8xf32> to vector<8x1xf32>
    %17 = vector.broadcast %16 : vector<8x1xf32> to vector<8x128xf32>
    %18 = arith.subf %14, %17 : vector<8x128xf32>
    %19 = math.exp %18 : vector<8x128xf32>
    %cst_10 = arith.constant dense<0.000000e+00> : vector<8xf32>
    %20 = vector.multi_reduction <add>, %19, %cst_10 [1] : vector<8x128xf32> to vector<8xf32>
    %21 = vector.shape_cast %20 : vector<8xf32> to vector<8x1xf32>
    %22 = math.log %21 : vector<8x1xf32>
    %23 = vector.broadcast %22 : vector<8x1xf32> to vector<8x128xf32>
    %24 = arith.subf %18, %23 : vector<8x128xf32>
    %c0_11 = arith.constant 0 : index
    %c0_12 = arith.constant 0 : index
    %25 = vector.load %arg5[%c0_11, %c0_12] : memref<8x128xf32, #tpu.memory_space<vmem>>, vector<8x128xf32>
    tpu.vector_store %arg5[%c0_11, %c0_12], %24 {strides = array<i32>} : memref<8x128xf32, #tpu.memory_space<vmem>>, vector<8x128xf32>,
    return
  }
  func.func @transform_0(%arg0: i32) -> (i32, i32) {
    %c0_i32 = arith.constant 0 : i32
    %c0_i32_0 = arith.constant 0 : i32
    return %arg0, %c0_i32 : i32, i32
  }
  func.func @transform_1(%arg0: i32) -> (i32, i32) {
    %c0_i32 = arith.constant 0 : i32
    %c0_i32_0 = arith.constant 0 : i32
    %c0_i32_1 = arith.constant 0 : i32
    return %c0_i32, %c0_i32_0 : i32, i32
  }
  func.func @transform_2(%arg0: i32) -> (i32, i32) {
    %c0_i32 = arith.constant 0 : i32
    %c0_i32_0 = arith.constant 0 : i32
    %c0_i32_1 = arith.constant 0 : i32
    return %c0_i32, %c0_i32_0 : i32, i32
  }
  func.func @transform_3(%arg0: i32) -> (i32, i32) {
    %c0_i32 = arith.constant 0 : i32
    %c0_i32_0 = arith.constant 0 : i32
    %c0_i32_1 = arith.constant 0 : i32
    return %c0_i32, %c0_i32_0 : i32, i32
  }
  func.func @transform_4(%arg0: i32) -> (i32, i32) {
    %c0_i32 = arith.constant 0 : i32
    %c0_i32_0 = arith.constant 0 : i32
    return %arg0, %c0_i32 : i32, i32
  }
}

</mosaic_0001>

<llo_original>
// kernel: tpu_custom_call.1
$region0: #{tpu_custom_call.1}
  #allocation0 [shape = 'u32[]', space=smem, size = 0x4, offset = 0x4, fixed_abs, tag = 'smem constant byte address 0x4 - core index']
  #allocation1 [shape = 'u32[72,128]{1,0:T(1,128)}', space=vmem, size = 0x9000, scoped, tag = 'internal scratch']
  %s0 = inlined_call_operand.hbm [shape: bf16[8,896], index: 0, kind: input, shape index: {}]
  %s1 = inlined_call_operand.hbm [shape: bf16[896,128], index: 1, kind: input, shape index: {}]
  %s2 = inlined_call_operand.vmem [shape: f32[1,128], index: 2, kind: input, shape index: {}]
  %s3 = inlined_call_operand.hbm [shape: bf16[128,128], index: 3, kind: input, shape index: {}]
  %s4 = inlined_call_operand.hbm [shape: f32[8,128], index: 4, kind: output, shape index: {}]
  %s5 = sld [smem:[#allocation0]]
  $region38: #{tpu_custom_call.1} parent=0
    _
  %s7 = ssub.s32 1, %s5
  %s8 = scalar_select 0, %s7, %s5
  $region1: #{tpu_custom_call.1} parent=0
    #allocation2 [shape = 'u8[14336]{0}', space=vmem, size = 0x3800, scoped, tag = 'input window, operand 0, single buffered']
    #allocation3 [shape = 's32[1]{0}', space=sflag, size = 0x4, scoped, tag = 'scoped memory for tpu_custom_call.1']
    #allocation4 [shape = 's32[1]{0}', space=sflag, size = 0x4, scoped, tag = 'scoped memory for tpu_custom_call.1']
    #allocation5 [shape = 'u8[229376]{0}', space=vmem, size = 0x38000, scoped, tag = 'input window, operand 1, single buffered']
    #allocation6 [shape = 's32[1]{0}', space=sflag, size = 0x4, scoped, tag = 'scoped memory for tpu_custom_call.1']
    #allocation7 [shape = 'u8[32768]{0}', space=vmem, size = 0x8000, scoped, tag = 'input window, operand 3, single buffered']
    #allocation8 [shape = 'u8[4096]{0}', space=vmem, size = 0x1000, scoped, tag = 'output window, operand 0, single buffered']
    %9 = vsyncpa [#allocation3], 0
    %10 = vsyncpa [#allocation6], 0
    %11 = vsyncpa [#allocation4], 0
    // Predicated region
    $region2: #{tpu_custom_call.1} parent=1 // pred_check
      _
    $region3: #{tpu_custom_call.1} parent=1 // pred_check_branch
      %13 = sbr.rel (0) target = $region5
    $region4: #{tpu_custom_call.1} parent=1 // pred_region
      %15 = vsyncadd [#allocation3], 0
      %s17 = sshll.u32 %s0, 4
      %s18 = int_to_ptr.hbm [resolvable:$true] %s17
      %s19 = sshll.u32 [#allocation2], 4
      %s20 = int_to_ptr.vmem [resolvable:$true] %s19
      %22 = dma.hbm_to_vmem [thread:$0]  %s18, 448, %s20, [#allocation3]
    $region5: #{tpu_custom_call.1} parent=1 // pred_fallthru
      _
    // Predicated region
    $region6: #{tpu_custom_call.1} parent=1 // pred_check
      _
    $region7: #{tpu_custom_call.1} parent=1 // pred_check_branch
      %24 = sbr.rel (0) target = $region9
    $region8: #{tpu_custom_call.1} parent=1 // pred_region
      %26 = vsyncadd [#allocation6], 0
      %s27 = sshll.u32 %s1, 4
      %s28 = int_to_ptr.hbm [resolvable:$true] %s27
      %s29 = sshll.u32 [#allocation5], 4
      %s30 = int_to_ptr.vmem [resolvable:$true] %s29
      %35 = dma.hbm_to_vmem [thread:$0]  %s28, 7168, %s30, [#allocation6], 64, 64, 4
    $region9: #{tpu_custom_call.1} parent=1 // pred_fallthru
      _
    // Predicated region
    $region10: #{tpu_custom_call.1} parent=1 // pred_check
      _
    $region11: #{tpu_custom_call.1} parent=1 // pred_check_branch
      %37 = sbr.rel (0) target = $region13
    $region12: #{tpu_custom_call.1} parent=1 // pred_region
      _
    $region13: #{tpu_custom_call.1} parent=1 // pred_fallthru
      _
    // Predicated region
    $region14: #{tpu_custom_call.1} parent=1 // pred_check
      _
    $region15: #{tpu_custom_call.1} parent=1 // pred_check_branch
      %39 = sbr.rel (0) target = $region17
    $region16: #{tpu_custom_call.1} parent=1 // pred_region
      %41 = vsyncadd [#allocation6], 0
      %s42 = sshll.u32 %s3, 4
      %s43 = int_to_ptr.hbm [resolvable:$true] %s42
      %s44 = sshll.u32 [#allocation7], 4
      %s45 = int_to_ptr.vmem [resolvable:$true] %s44
      %50 = dma.hbm_to_vmem [thread:$0]  %s43, 1024, %s45, [#allocation6], 64, 64, 4
    $region17: #{tpu_custom_call.1} parent=1 // pred_fallthru
      _
    // Predicated region
    $region18: #{tpu_custom_call.1} parent=1 // pred_check
      _
    $region19: #{tpu_custom_call.1} parent=1 // pred_check_branch
      %52 = sbr.rel (0) target = $region21
    $region20: #{tpu_custom_call.1} parent=1 // pred_region
      %54 = dma.done [#allocation3], 448
    $region21: #{tpu_custom_call.1} parent=1 // pred_fallthru
      _
    // Predicated region
    $region22: #{tpu_custom_call.1} parent=1 // pred_check
      _
    $region23: #{tpu_custom_call.1} parent=1 // pred_check_branch
      %56 = sbr.rel (0) target = $region25
    $region24: #{tpu_custom_call.1} parent=1 // pred_region
      %58 = dma.done [#allocation6], 7168
    $region25: #{tpu_custom_call.1} parent=1 // pred_fallthru
      _
    // Predicated region
    $region26: #{tpu_custom_call.1} parent=1 // pred_check
      _
    $region27: #{tpu_custom_call.1} parent=1 // pred_check_branch
      %60 = sbr.rel (0) target = $region29
    $region28: #{tpu_custom_call.1} parent=1 // pred_region
      %62 = dma.done [#allocation6], 1024
    $region29: #{tpu_custom_call.1} parent=1 // pred_fallthru
      _
    %v63 = vld [vmem:[#allocation2] sm:$0xff]
    %v64 = vld [vmem:[#allocation2 + $0x8] sm:$0xff]
    %v65 = vld [vmem:[#allocation2 + $0x10] sm:$0xff]
    %v66 = vld [vmem:[#allocation2 + $0x18] sm:$0xf]
    %v67 = vld [vmem:[#allocation5] sm:$0xf]
    %v68 = vld [vmem:[#allocation5 + $0x4] sm:$0xf]
    %v69 = vld [vmem:[#allocation5 + $0x8] sm:$0xf]
    %v70 = vld [vmem:[#allocation5 + $0xc] sm:$0xf]
    %v71 = vld [vmem:[#allocation5 + $0x10] sm:$0xf]
    %v72 = vld [vmem:[#allocation5 + $0x14] sm:$0xf]
    %v73 = vld [vmem:[#allocation5 + $0x18] sm:$0xf]
    %v74 = vld [vmem:[#allocation5 + $0x1c] sm:$0xf]
    %v75 = vld [vmem:[#allocation5 + $0x20] sm:$0xf]
    %v76 = vld [vmem:[#allocation5 + $0x24] sm:$0xf]
    %v77 = vld [vmem:[#allocation5 + $0x28] sm:$0xf]
    %v78 = vld [vmem:[#allocation5 + $0x2c] sm:$0xf]
    %v79 = vld [vmem:[#allocation5 + $0x30] sm:$0xf]
    %v80 = vld [vmem:[#allocation5 + $0x34] sm:$0xf]
    %v81 = vld [vmem:[#allocation5 + $0x38] sm:$0xf]
    %v82 = vld [vmem:[#allocation5 + $0x3c] sm:$0xf]
    %v83 = vld [vmem:[#allocation5 + $0x40] sm:$0xf]
    %v84 = vld [vmem:[#allocation5 + $0x44] sm:$0xf]
    %v85 = vld [vmem:[#allocation5 + $0x48] sm:$0xf]
    %v86 = vld [vmem:[#allocation5 + $0x4c] sm:$0xf]
    %v87 = vld [vmem:[#allocation5 + $0x50] sm:$0xf]
    %v88 = vld [vmem:[#allocation5 + $0x54] sm:$0xf]
    %v89 = vld [vmem:[#allocation5 + $0x58] sm:$0xf]
    %v90 = vld [vmem:[#allocation5 + $0x5c] sm:$0xf]
    %v91 = vld [vmem:[#allocation5 + $0x60] sm:$0xf]
    %v92 = vld [vmem:[#allocation5 + $0x64] sm:$0xf]
    %v93 = vld [vmem:[#allocation5 + $0x68] sm:$0xf]
    %v94 = vld [vmem:[#allocation5 + $0x6c] sm:$0xf]
    %v95 = vld [vmem:[#allocation5 + $0x70] sm:$0xf]
    %v96 = vld [vmem:[#allocation5 + $0x74] sm:$0xf]
    %v97 = vld [vmem:[#allocation5 + $0x78] sm:$0xf]
    %v98 = vld [vmem:[#allocation5 + $0x7c] sm:$0xf]
    %v99 = vld [vmem:[#allocation5 + $0x80] sm:$0xf]
    %v100 = vld [vmem:[#allocation5 + $0x84] sm:$0xf]
    %v101 = vld [vmem:[#allocation5 + $0x88] sm:$0xf]
    %v102 = vld [vmem:[#allocation5 + $0x8c] sm:$0xf]
    %v103 = vld [vmem:[#allocation5 + $0x90] sm:$0xf]
    %v104 = vld [vmem:[#allocation5 + $0x94] sm:$0xf]
    %v105 = vld [vmem:[#allocation5 + $0x98] sm:$0xf]
    %v106 = vld [vmem:[#allocation5 + $0x9c] sm:$0xf]
    %v107 = vld [vmem:[#allocation5 + $0xa0] sm:$0xf]
    %v108 = vld [vmem:[#allocation5 + $0xa4] sm:$0xf]
    %v109 = vld [vmem:[#allocation5 + $0xa8] sm:$0xf]
    %v110 = vld [vmem:[#allocation5 + $0xac] sm:$0xf]
    %v111 = vld [vmem:[#allocation5 + $0xb0] sm:$0xf]
    %v112 = vld [vmem:[#allocation5 + $0xb4] sm:$0xf]
    %v113 = vld [vmem:[#allocation5 + $0xb8] sm:$0xf]
    %v114 = vld [vmem:[#allocation5 + $0xbc] sm:$0xf]
    %v115 = vld [vmem:[#allocation5 + $0xc0] sm:$0xf]
    %v116 = vld [vmem:[#allocation5 + $0xc4] sm:$0xf]
    %v117 = vld [vmem:[#allocation5 + $0xc8] sm:$0xf]
    %v118 = vld [vmem:[#allocation5 + $0xcc] sm:$0xf]
    %v119 = vld [vmem:[#allocation5 + $0xd0] sm:$0xf]
    %v120 = vld [vmem:[#allocation5 + $0xd4] sm:$0xf]
    %v121 = vld [vmem:[#allocation5 + $0xd8] sm:$0xf]
    %v122 = vld [vmem:[#allocation5 + $0xdc] sm:$0xf]
    %v123 = vld [vmem:[#allocation5 + $0xe0] sm:$0xf]
    %v124 = vld [vmem:[#allocation5 + $0xe4] sm:$0xf]
    %v125 = vld [vmem:[#allocation5 + $0xe8] sm:$0xf]
    %v126 = vld [vmem:[#allocation5 + $0xec] sm:$0xf]
    %v127 = vld [vmem:[#allocation5 + $0xf0] sm:$0xf]
    %v128 = vld [vmem:[#allocation5 + $0xf4] sm:$0xf]
    %v129 = vld [vmem:[#allocation5 + $0xf8] sm:$0xf]
    %v130 = vld [vmem:[#allocation5 + $0xfc] sm:$0xf]
    %v131 = vld [vmem:[#allocation5 + $0x100] sm:$0xf]
    %v132 = vld [vmem:[#allocation5 + $0x104] sm:$0xf]
    %v133 = vld [vmem:[#allocation5 + $0x108] sm:$0xf]
    %v134 = vld [vmem:[#allocation5 + $0x10c] sm:$0xf]
    %v135 = vld [vmem:[#allocation5 + $0x110] sm:$0xf]
    %v136 = vld [vmem:[#allocation5 + $0x114] sm:$0xf]
    %v137 = vld [vmem:[#allocation5 + $0x118] sm:$0xf]
    %v138 = vld [vmem:[#allocation5 + $0x11c] sm:$0xf]
    %v139 = vld [vmem:[#allocation5 + $0x120] sm:$0xf]
    %v140 = vld [vmem:[#allocation5 + $0x124] sm:$0xf]
    %v141 = vld [vmem:[#allocation5 + $0x128] sm:$0xf]
    %v142 = vld [vmem:[#allocation5 + $0x12c] sm:$0xf]
    %v143 = vld [vmem:[#allocation5 + $0x130] sm:$0xf]
    %v144 = vld [vmem:[#allocation5 + $0x134] sm:$0xf]
    %v145 = vld [vmem:[#allocation5 + $0x138] sm:$0xf]
    %v146 = vld [vmem:[#allocation5 + $0x13c] sm:$0xf]
    %v147 = vld [vmem:[#allocation5 + $0x140] sm:$0xf]
    %v148 = vld [vmem:[#allocation5 + $0x144] sm:$0xf]
    %v149 = vld [vmem:[#allocation5 + $0x148] sm:$0xf]
    %v150 = vld [vmem:[#allocation5 + $0x14c] sm:$0xf]
    %v151 = vld [vmem:[#allocation5 + $0x150] sm:$0xf]
    %v152 = vld [vmem:[#allocation5 + $0x154] sm:$0xf]
    %v153 = vld [vmem:[#allocation5 + $0x158] sm:$0xf]
    %v154 = vld [vmem:[#allocation5 + $0x15c] sm:$0xf]
    %v155 = vld [vmem:[#allocation5 + $0x160] sm:$0xf]
    %v156 = vld [vmem:[#allocation5 + $0x164] sm:$0xf]
    %v157 = vld [vmem:[#allocation5 + $0x168] sm:$0xf]
    %v158 = vld [vmem:[#allocation5 + $0x16c] sm:$0xf]
    %v159 = vld [vmem:[#allocation5 + $0x170] sm:$0xf]
    %v160 = vld [vmem:[#allocation5 + $0x174] sm:$0xf]
    %v161 = vld [vmem:[#allocation5 + $0x178] sm:$0xf]
    %v162 = vld [vmem:[#allocation5 + $0x17c] sm:$0xf]
    %v163 = vld [vmem:[#allocation5 + $0x180] sm:$0xf]
    %v164 = vld [vmem:[#allocation5 + $0x184] sm:$0xf]
    %v165 = vld [vmem:[#allocation5 + $0x188] sm:$0xf]
    %v166 = vld [vmem:[#allocation5 + $0x18c] sm:$0xf]
    %v167 = vld [vmem:[#allocation5 + $0x190] sm:$0xf]
    %v168 = vld [vmem:[#allocation5 + $0x194] sm:$0xf]
    %v169 = vld [vmem:[#allocation5 + $0x198] sm:$0xf]
    %v170 = vld [vmem:[#allocation5 + $0x19c] sm:$0xf]
    %v171 = vld [vmem:[#allocation5 + $0x1a0] sm:$0xf]
    %v172 = vld [vmem:[#allocation5 + $0x1a4] sm:$0xf]
    %v173 = vld [vmem:[#allocation5 + $0x1a8] sm:$0xf]
    %v174 = vld [vmem:[#allocation5 + $0x1ac] sm:$0xf]
    %v175 = vld [vmem:[#allocation5 + $0x1b0] sm:$0xf]
    %v176 = vld [vmem:[#allocation5 + $0x1b4] sm:$0xf]
    %v177 = vld [vmem:[#allocation5 + $0x1b8] sm:$0xf]
    %v178 = vld [vmem:[#allocation5 + $0x1bc] sm:$0xf]
    %v179 = vld [vmem:[%s2] sm:$0x1]
    %v181 = vperm.slane %v179, 0
    %v187 = vunpack.c.l.b16 %v63
    %v188 = vunpack.c.h.b16 %v63
    %v189 = vunpack.c.l.b16 %v64
    %v190 = vunpack.c.h.b16 %v64
    %v191 = vunpack.c.l.b16 %v65
    %v192 = vunpack.c.h.b16 %v65
    %v193 = vunpack.c.l.b16 %v66
    %v194 = vpack.c.b16 %v187, %v187
    %v195 = vpack.c.b16 %v188, %v188
    %v196 = vpack.c.b16 %v189, %v189
    %v197 = vpack.c.b16 %v190, %v190
    %v198 = vpack.c.b16 %v191, %v191
    %v199 = vpack.c.b16 %v192, %v192
    %v200 = vpack.c.b16 %v193, %v193
    %v320 = vunpack.c.l.b16 %v67
    %v321 = vunpack.c.l.b16 %v68
    %v322 = vunpack.c.l.b16 %v69
    %v323 = vunpack.c.l.b16 %v70
    %v324 = vunpack.c.l.b16 %v71
    %v325 = vunpack.c.l.b16 %v72
    %v326 = vunpack.c.l.b16 %v73
    %v327 = vunpack.c.l.b16 %v74
    %v328 = vunpack.c.l.b16 %v75
    %v329 = vunpack.c.l.b16 %v76
    %v330 = vunpack.c.l.b16 %v77
    %v331 = vunpack.c.l.b16 %v78
    %v332 = vunpack.c.l.b16 %v79
    %v333 = vunpack.c.l.b16 %v80
    %v334 = vunpack.c.l.b16 %v81
    %v335 = vunpack.c.l.b16 %v82
    %v336 = vunpack.c.l.b16 %v83
    %v337 = vunpack.c.l.b16 %v84
    %v338 = vunpack.c.l.b16 %v85
    %v339 = vunpack.c.l.b16 %v86
    %v340 = vunpack.c.l.b16 %v87
    %v341 = vunpack.c.l.b16 %v88
    %v342 = vunpack.c.l.b16 %v89
    %v343 = vunpack.c.l.b16 %v90
    %v344 = vunpack.c.l.b16 %v91
    %v345 = vunpack.c.l.b16 %v92
    %v346 = vunpack.c.l.b16 %v93
    %v347 = vunpack.c.l.b16 %v94
    %v348 = vunpack.c.l.b16 %v95
    %v349 = vunpack.c.l.b16 %v96
    %v350 = vunpack.c.l.b16 %v97
    %v351 = vunpack.c.l.b16 %v98
    %v352 = vunpack.c.l.b16 %v99
    %v353 = vunpack.c.l.b16 %v100
    %v354 = vunpack.c.l.b16 %v101
    %v355 = vunpack.c.l.b16 %v102
    %v356 = vunpack.c.l.b16 %v103
    %v357 = vunpack.c.l.b16 %v104
    %v358 = vunpack.c.l.b16 %v105
    %v359 = vunpack.c.l.b16 %v106
    %v360 = vunpack.c.l.b16 %v107
    %v361 = vunpack.c.l.b16 %v108
    %v362 = vunpack.c.l.b16 %v109
    %v363 = vunpack.c.l.b16 %v110
    %v364 = vunpack.c.l.b16 %v111
    %v365 = vunpack.c.l.b16 %v112
    %v366 = vunpack.c.l.b16 %v113
    %v367 = vunpack.c.l.b16 %v114
    %v368 = vunpack.c.l.b16 %v115
    %v369 = vunpack.c.l.b16 %v116
    %v370 = vunpack.c.l.b16 %v117
    %v371 = vunpack.c.l.b16 %v118
    %v372 = vunpack.c.l.b16 %v119
    %v373 = vunpack.c.l.b16 %v120
    %v374 = vunpack.c.l.b16 %v121
    %v375 = vunpack.c.l.b16 %v122
    %v376 = vunpack.c.l.b16 %v123
    %v377 = vunpack.c.l.b16 %v124
    %v378 = vunpack.c.l.b16 %v125
    %v379 = vunpack.c.l.b16 %v126
    %v380 = vunpack.c.l.b16 %v127
    %v381 = vunpack.c.l.b16 %v128
    %v382 = vunpack.c.l.b16 %v129
    %v383 = vunpack.c.l.b16 %v130
    %v384 = vunpack.c.l.b16 %v131
    %v385 = vunpack.c.l.b16 %v132
    %v386 = vunpack.c.l.b16 %v133
    %v387 = vunpack.c.l.b16 %v134
    %v388 = vunpack.c.l.b16 %v135
    %v389 = vunpack.c.l.b16 %v136
    %v390 = vunpack.c.l.b16 %v137
    %v391 = vunpack.c.l.b16 %v138
    %v392 = vunpack.c.l.b16 %v139
    %v393 = vunpack.c.l.b16 %v140
    %v394 = vunpack.c.l.b16 %v141
    %v395 = vunpack.c.l.b16 %v142
    %v396 = vunpack.c.l.b16 %v143
    %v397 = vunpack.c.l.b16 %v144
    %v398 = vunpack.c.l.b16 %v145
    %v399 = vunpack.c.l.b16 %v146
    %v400 = vunpack.c.l.b16 %v147
    %v401 = vunpack.c.l.b16 %v148
    %v402 = vunpack.c.l.b16 %v149
    %v403 = vunpack.c.l.b16 %v150
    %v404 = vunpack.c.l.b16 %v151
    %v405 = vunpack.c.l.b16 %v152
    %v406 = vunpack.c.l.b16 %v153
    %v407 = vunpack.c.l.b16 %v154
    %v408 = vunpack.c.l.b16 %v155
    %v409 = vunpack.c.l.b16 %v156
    %v410 = vunpack.c.l.b16 %v157
    %v411 = vunpack.c.l.b16 %v158
    %v412 = vunpack.c.l.b16 %v159
    %v413 = vunpack.c.l.b16 %v160
    %v414 = vunpack.c.l.b16 %v161
    %v415 = vunpack.c.l.b16 %v162
    %v416 = vunpack.c.l.b16 %v163
    %v417 = vunpack.c.l.b16 %v164
    %v418 = vunpack.c.l.b16 %v165
    %v419 = vunpack.c.l.b16 %v166
    %v420 = vunpack.c.l.b16 %v167
    %v421 = vunpack.c.l.b16 %v168
    %v422 = vunpack.c.l.b16 %v169
    %v423 = vunpack.c.l.b16 %v170
    %v424 = vunpack.c.l.b16 %v171
    %v425 = vunpack.c.l.b16 %v172
    %v426 = vunpack.c.l.b16 %v173
    %v427 = vunpack.c.l.b16 %v174
    %v428 = vunpack.c.l.b16 %v175
    %v429 = vunpack.c.l.b16 %v176
    %v430 = vunpack.c.l.b16 %v177
    %v431 = vunpack.c.l.b16 %v178
    %v432 = vpack.c.b16 %v321, %v320
    %v433 = vpack.c.b16 %v323, %v322
    %v434 = vpack.c.b16 %v325, %v324
    %v435 = vpack.c.b16 %v327, %v326
    %v436 = vpack.c.b16 %v329, %v328
    %v437 = vpack.c.b16 %v331, %v330
    %v438 = vpack.c.b16 %v333, %v332
    %v439 = vpack.c.b16 %v335, %v334
    %v440 = vpack.c.b16 %v337, %v336
    %v441 = vpack.c.b16 %v339, %v338
    %v442 = vpack.c.b16 %v341, %v340
    %v443 = vpack.c.b16 %v343, %v342
    %v444 = vpack.c.b16 %v345, %v344
    %v445 = vpack.c.b16 %v347, %v346
    %v446 = vpack.c.b16 %v349, %v348
    %v447 = vpack.c.b16 %v351, %v350
    %v448 = vpack.c.b16 %v353, %v352
    %v449 = vpack.c.b16 %v355, %v354
    %v450 = vpack.c.b16 %v357, %v356
    %v451 = vpack.c.b16 %v359, %v358
    %v452 = vpack.c.b16 %v361, %v360
    %v453 = vpack.c.b16 %v363, %v362
    %v454 = vpack.c.b16 %v365, %v364
    %v455 = vpack.c.b16 %v367, %v366
    %v456 = vpack.c.b16 %v369, %v368
    %v457 = vpack.c.b16 %v371, %v370
    %v458 = vpack.c.b16 %v373, %v372
    %v459 = vpack.c.b16 %v375, %v374
    %v460 = vpack.c.b16 %v377, %v376
    %v461 = vpack.c.b16 %v379, %v378
    %v462 = vpack.c.b16 %v381, %v380
    %v463 = vpack.c.b16 %v383, %v382
    %v464 = vpack.c.b16 %v385, %v384
    %v465 = vpack.c.b16 %v387, %v386
    %v466 = vpack.c.b16 %v389, %v388
    %v467 = vpack.c.b16 %v391, %v390
    %v468 = vpack.c.b16 %v393, %v392
    %v469 = vpack.c.b16 %v395, %v394
    %v470 = vpack.c.b16 %v397, %v396
    %v471 = vpack.c.b16 %v399, %v398
    %v472 = vpack.c.b16 %v401, %v400
    %v473 = vpack.c.b16 %v403, %v402
    %v474 = vpack.c.b16 %v405, %v404
    %v475 = vpack.c.b16 %v407, %v406
    %v476 = vpack.c.b16 %v409, %v408
    %v477 = vpack.c.b16 %v411, %v410
    %v478 = vpack.c.b16 %v413, %v412
    %v479 = vpack.c.b16 %v415, %v414
    %v480 = vpack.c.b16 %v417, %v416
    %v481 = vpack.c.b16 %v419, %v418
    %v482 = vpack.c.b16 %v421, %v420
    %v483 = vpack.c.b16 %v423, %v422
    %v484 = vpack.c.b16 %v425, %v424
    %v485 = vpack.c.b16 %v427, %v426
    %v486 = vpack.c.b16 %v429, %v428
    %v487 = vpack.c.b16 %v431, %v430
    %544 = vmatpush.bf16.msra.mxu0 %v439
    %545 = vmatpush.bf16.msra.mxu0 %v438
    %546 = vmatpush.bf16.msra.mxu0 %v437
    %547 = vmatpush.bf16.msra.mxu0 %v436
    %548 = vmatpush.bf16.msra.mxu0 %v435
    %549 = vmatpush.bf16.msra.mxu0 %v434
    %550 = vmatpush.bf16.msra.mxu0 %v433
    %551 = vmatpush.bf16.msra.mxu0 %v432
    %552 = vmatmul.bf16.gmra.mxu0 %v194
    %v553 = vpop.f32.mrf.mxu0
    %v554 = vadd.f32 %v181, %v553
    %v555 = vpop.f32.mrf.mxu0
    %556 = vdwg.mxu0
    %557 = vmatpush.bf16.msra.mxu0 %v447
    %558 = vmatpush.bf16.msra.mxu0 %v446
    %559 = vmatpush.bf16.msra.mxu0 %v445
    %560 = vmatpush.bf16.msra.mxu0 %v444
    %561 = vmatpush.bf16.msra.mxu0 %v443
    %562 = vmatpush.bf16.msra.mxu0 %v442
    %563 = vmatpush.bf16.msra.mxu0 %v441
    %564 = vmatpush.bf16.msra.mxu0 %v440
    %565 = vmatmul.bf16.gmra.mxu0 %v195
    %v566 = vpop.f32.mrf.mxu0
    %v567 = vadd.f32 %v554, %v566
    %v568 = vpop.f32.mrf.mxu0
    %569 = vdwg.mxu0
    %570 = vmatpush.bf16.msra.mxu0 %v455
    %571 = vmatpush.bf16.msra.mxu0 %v454
    %572 = vmatpush.bf16.msra.mxu0 %v453
    %573 = vmatpush.bf16.msra.mxu0 %v452
    %574 = vmatpush.bf16.msra.mxu0 %v451
    %575 = vmatpush.bf16.msra.mxu0 %v450
    %576 = vmatpush.bf16.msra.mxu0 %v449
    %577 = vmatpush.bf16.msra.mxu0 %v448
    %578 = vmatmul.bf16.gmra.mxu0 %v196
    %v579 = vpop.f32.mrf.mxu0
    %v580 = vadd.f32 %v567, %v579
    %v581 = vpop.f32.mrf.mxu0
    %582 = vdwg.mxu0
    %583 = vmatpush.bf16.msra.mxu0 %v463
    %584 = vmatpush.bf16.msra.mxu0 %v462
    %585 = vmatpush.bf16.msra.mxu0 %v461
    %586 = vmatpush.bf16.msra.mxu0 %v460
    %587 = vmatpush.bf16.msra.mxu0 %v459
    %588 = vmatpush.bf16.msra.mxu0 %v458
    %589 = vmatpush.bf16.msra.mxu0 %v457
    %590 = vmatpush.bf16.msra.mxu0 %v456
    %591 = vmatmul.bf16.gmra.mxu0 %v197
    %v592 = vpop.f32.mrf.mxu0
    %v593 = vadd.f32 %v580, %v592
    %v594 = vpop.f32.mrf.mxu0
    %595 = vdwg.mxu0
    %596 = vmatpush.bf16.msra.mxu0 %v471
    %597 = vmatpush.bf16.msra.mxu0 %v470
    %598 = vmatpush.bf16.msra.mxu0 %v469
    %599 = vmatpush.bf16.msra.mxu0 %v468
    %600 = vmatpush.bf16.msra.mxu0 %v467
    %601 = vmatpush.bf16.msra.mxu0 %v466
    %602 = vmatpush.bf16.msra.mxu0 %v465
    %603 = vmatpush.bf16.msra.mxu0 %v464
    %604 = vmatmul.bf16.gmra.mxu0 %v198
    %v605 = vpop.f32.mrf.mxu0
    %v606 = vadd.f32 %v593, %v605
    %v607 = vpop.f32.mrf.mxu0
    %608 = vdwg.mxu0
    %609 = vmatpush.bf16.msra.mxu0 %v479
    %610 = vmatpush.bf16.msra.mxu0 %v478
    %611 = vmatpush.bf16.msra.mxu0 %v477
    %612 = vmatpush.bf16.msra.mxu0 %v476
    %613 = vmatpush.bf16.msra.mxu0 %v475
    %614 = vmatpush.bf16.msra.mxu0 %v474
    %615 = vmatpush.bf16.msra.mxu0 %v473
    %616 = vmatpush.bf16.msra.mxu0 %v472
    %617 = vmatmul.bf16.gmra.mxu0 %v199
    %v618 = vpop.f32.mrf.mxu0
    %v619 = vadd.f32 %v606, %v618
    %v620 = vpop.f32.mrf.mxu0
    %621 = vdwg.mxu0
    %622 = vmatpush.bf16.msra.mxu0 %v487
    %623 = vmatpush.bf16.msra.mxu0 %v486
    %624 = vmatpush.bf16.msra.mxu0 %v485
    %625 = vmatpush.bf16.msra.mxu0 %v484
    %626 = vmatpush.bf16.msra.mxu0 %v483
    %627 = vmatpush.bf16.msra.mxu0 %v482
    %628 = vmatpush.bf16.msra.mxu0 %v481
    %629 = vmatpush.bf16.msra.mxu0 %v480
    %630 = vmatmul.bf16.gmra.mxu0 %v200
    %v631 = vpop.f32.mrf.mxu0
    %v632 = vadd.f32 %v619, %v631
    %v633 = vpop.f32.mrf.mxu0
    %634 = vdwg.mxu0
    %v635 = vtanh.pop %v632
    %v636 = vpack.c.bf16 %v635, %v635
    %v637 = vld [vmem:[#allocation7] sm:$0xf]
    %v638 = vld [vmem:[#allocation7 + $0x4] sm:$0xf]
    %v639 = vld [vmem:[#allocation7 + $0x8] sm:$0xf]
    %v640 = vld [vmem:[#allocation7 + $0xc] sm:$0xf]
    %v641 = vld [vmem:[#allocation7 + $0x10] sm:$0xf]
    %v642 = vld [vmem:[#allocation7 + $0x14] sm:$0xf]
    %v643 = vld [vmem:[#allocation7 + $0x18] sm:$0xf]
    %v644 = vld [vmem:[#allocation7 + $0x1c] sm:$0xf]
    %v645 = vld [vmem:[#allocation7 + $0x20] sm:$0xf]
    %v646 = vld [vmem:[#allocation7 + $0x24] sm:$0xf]
    %v647 = vld [vmem:[#allocation7 + $0x28] sm:$0xf]
    %v648 = vld [vmem:[#allocation7 + $0x2c] sm:$0xf]
    %v649 = vld [vmem:[#allocation7 + $0x30] sm:$0xf]
    %v650 = vld [vmem:[#allocation7 + $0x34] sm:$0xf]
    %v651 = vld [vmem:[#allocation7 + $0x38] sm:$0xf]
    %v652 = vld [vmem:[#allocation7 + $0x3c] sm:$0xf]
    %v669 = vunpack.c.l.b16 %v637
    %v670 = vunpack.c.l.b16 %v638
    %v671 = vunpack.c.l.b16 %v639
    %v672 = vunpack.c.l.b16 %v640
    %v673 = vunpack.c.l.b16 %v641
    %v674 = vunpack.c.l.b16 %v642
    %v675 = vunpack.c.l.b16 %v643
    %v676 = vunpack.c.l.b16 %v644
    %v677 = vunpack.c.l.b16 %v645
    %v678 = vunpack.c.l.b16 %v646
    %v679 = vunpack.c.l.b16 %v647
    %v680 = vunpack.c.l.b16 %v648
    %v681 = vunpack.c.l.b16 %v649
    %v682 = vunpack.c.l.b16 %v650
    %v683 = vunpack.c.l.b16 %v651
    %v684 = vunpack.c.l.b16 %v652
    %v685 = vpack.c.b16 %v670, %v669
    %v686 = vpack.c.b16 %v672, %v671
    %v687 = vpack.c.b16 %v674, %v673
    %v688 = vpack.c.b16 %v676, %v675
    %v689 = vpack.c.b16 %v678, %v677
    %v690 = vpack.c.b16 %v680, %v679
    %v691 = vpack.c.b16 %v682, %v681
    %v692 = vpack.c.b16 %v684, %v683
    %701 = vmatpush.bf16.msra.mxu0 %v692
    %702 = vmatpush.bf16.msra.mxu0 %v691
    %703 = vmatpush.bf16.msra.mxu0 %v690
    %704 = vmatpush.bf16.msra.mxu0 %v689
    %705 = vmatpush.bf16.msra.mxu0 %v688
    %706 = vmatpush.bf16.msra.mxu0 %v687
    %707 = vmatpush.bf16.msra.mxu0 %v686
    %708 = vmatpush.bf16.msra.mxu0 %v685
    %709 = vmatmul.bf16.gmra.mxu0 %v636
    %v710 = vpop.f32.mrf.mxu0
    %v711 = vadd.f32 0.0, %v710
    %v712 = vpop.f32.mrf.mxu0
    %713 = vdwg.mxu0
    %v714 = vlaneseq
    %v715 = vand.u32 %v714, 127
    %vm716 = vcmp.lt.s32.totalorder %v715, 10
    %v717 = vsel %vm716, %v711, -1e+30
    %718 = vmax.xlane.f32.xlu0 %v717
    %v719 = vpop.xlane.xlu0 %718
    %v720 = vsub.f32 %v717, %v719
    %v721 = vmul.f32 %v720, 1.442695
    %v722 = vpow.pop %v721
    %723 = vadd.xlane.f32.xlu0 %v722
    %v724 = vpop.xlane.xlu0 %723
    %v725 = vlog2.pop %v724
    %v726 = vmul.f32 %v725, 0.6931472
    %v727 = vsub.f32 %v720, %v726
    %728 = vst [vmem:[#allocation8] sm:$0xff] %v727
    // Predicated region
    $region30: #{tpu_custom_call.1} parent=1 // pred_check
      _
    $region31: #{tpu_custom_call.1} parent=1 // pred_check_branch
      %730 = sbr.rel (0) target = $region33
    $region32: #{tpu_custom_call.1} parent=1 // pred_region
      %732 = vsyncadd [#allocation4], 0
      %s734 = sshll.u32 [#allocation8], 4
      %s735 = int_to_ptr.vmem [resolvable:$true] %s734
      %s736 = sshll.u32 %s4, 4
      %s737 = int_to_ptr.hbm [resolvable:$true] %s736
      %739 = dma.vmem_to_hbm [thread:$0]  %s735, 128, %s737, [#allocation4]
    $region33: #{tpu_custom_call.1} parent=1 // pred_fallthru
      _
    // Predicated region
    $region34: #{tpu_custom_call.1} parent=1 // pred_check
      _
    $region35: #{tpu_custom_call.1} parent=1 // pred_check_branch
      %741 = sbr.rel (0) target = $region37
    $region36: #{tpu_custom_call.1} parent=1 // pred_region
      %743 = dma.done [#allocation4], 128
    $region37: #{tpu_custom_call.1} parent=1 // pred_fallthru
      _
    %744 = vsyncpa [#allocation3], 1
    %745 = vsyncpa [#allocation6], 1
    %746 = vsyncpa [#allocation4], 1

</llo_original>
